<compile_context>
chip_gen: v7x
topology: tpu7x:2x2x1
jax: 0.10.0
libtpu: 0.0.40
codegen_flags: <defaults>
</compile_context>

<pallas_src>
import jax
import jax.numpy as jnp
from jax.experimental import pallas as pl
from jax.experimental.pallas import tpu as pltpu

NOISE_DIM = 16
HIDDEN = 64
IMG_DIM = 8
OUT_DIM = IMG_DIM * IMG_DIM  # 64
PACK = 2                     # batch rows per output lane-row: PACK * OUT_DIM == 128
CHUNK_PACKED_ROWS = 512      # in-kernel compute-chunk size (bounds VMEM temps)


def _round_up(x, m):
    return ((x + m - 1) // m) * m


def _make_generator_kernel(tbp, chunk):
    """Kernel factory; tbp (tile packed-rows) and chunk are static."""
    n_chunks = tbp // chunk

    def kernel(z_ref, w1_ref, b1_ref, w2_ref, b2_ref, o_ref):
        # z_ref : (tbp, PACK*NOISE_DIM) f32   -- two batch rows per sublane row
        # w1_ref: (PACK*NOISE_DIM, PACK*HIDDEN) bf16   block-diag(W1, W1)
        # b1_ref: (1, PACK*HIDDEN) f32
        # w2_ref: (PACK*HIDDEN, PACK*OUT_DIM) bf16     block-diag(W2, W2)
        # b2_ref: (1, PACK*OUT_DIM) f32
        # o_ref : (tbp, PACK*OUT_DIM)                  lane-dense (..., 128) output
        w1 = w1_ref[...]
        b1 = b1_ref[...]
        w2 = w2_ref[...]
        b2 = b2_ref[...]

        def compute_chunk(c):
            r = pl.multiple_of(c * chunk, chunk)
            z = z_ref[pl.ds(r, chunk), :].astype(jnp.bfloat16)
            # Layer 1: bf16 MXU matmul, f32 accumulate; bias + ReLU in f32.
            h = jnp.dot(z, w1, preferred_element_type=jnp.float32) + b1
            h = jnp.maximum(h, 0.0)
            # Layer 2: bf16 MXU matmul, f32 accumulate; bias in f32.
            y = jnp.dot(h.astype(jnp.bfloat16), w2,
                        preferred_element_type=jnp.float32) + b2
            # sigmoid(y) = 1 / (1 + exp(-y)); approx reciprocal uses the EUP slot.
            o = pl.reciprocal(1.0 + jnp.exp(-y), approx=True)
            o_ref[pl.ds(r, chunk), :] = o.astype(o_ref.dtype)

        if n_chunks == 1:
            compute_chunk(0)
        else:
            def body(c, carry):
                compute_chunk(c)
                return carry
            jax.lax.fori_loop(0, n_chunks, body, 0, unroll=n_chunks <= 8)

    return kernel


def _block_diag2(w):
    """diag(w, w) — tiny, built once in the wrapper."""
    r, c = w.shape
    zero = jnp.zeros((r, c), w.dtype)
    top = jnp.concatenate([w, zero], axis=1)
    bot = jnp.concatenate([zero, w], axis=1)
    return jnp.concatenate([top, bot], axis=0)


def generator_forward(z, w1, b1, w2, b2, img_dim=IMG_DIM, block_rows=16384,
                      out_dtype=jnp.float32):
    """z: (B, noise_dim) f32 -> img: (B, 1, img_dim, img_dim) in `out_dtype`."""
    B, noise_dim = z.shape
    out_dim = w2.shape[1]
    assert out_dim == img_dim * img_dim
    assert PACK * out_dim == 128, "packing factor is derived for img_dim=8"

    # Packed (block-diagonal) weights in bf16 for the MXU; biases stay f32.
    w1p = _block_diag2(w1).astype(jnp.bfloat16)   # (2*nd, 2*hidden)
    w2p = _block_diag2(w2).astype(jnp.bfloat16)   # (2*hidden, 128)
    b1p = jnp.concatenate([b1, b1], axis=-1)      # (1, 2*hidden) f32
    b2p = jnp.concatenate([b2, b2], axis=-1)      # (1, 128)      f32

    # Pack two batch rows per lane-row.  Only an odd batch needs a pad row.
    B_even = B if B % 2 == 0 else B + 1
    if B_even != B:
        # TODO(synk): odd-B path copies z once for the single pad row.
        z = jnp.pad(z, ((0, 1), (0, 0)))
    Bp = B_even // PACK
    z_packed = z.reshape(Bp, PACK * noise_dim)    # free row-major repack

    # Tile selection: multiple of 8 sublanes, >= 2 grid steps when the batch
    # allows (v7x dual-TC), multiple of the chunk size when chunking kicks in.
    tbp_target = max(8, (block_rows // PACK) // 8 * 8)
    if Bp <= 8:
        tbp = Bp                                  # equal to full array dim
    else:
        tbp = max(8, min(tbp_target, _round_up((Bp + 1) // 2, 8)))
    if tbp >= CHUNK_PACKED_ROWS:
        tbp = (tbp // CHUNK_PACKED_ROWS) * CHUNK_PACKED_ROWS
        chunk = CHUNK_PACKED_ROWS
    else:
        chunk = tbp

    grid = (pl.cdiv(Bp, tbp),)   # non-divisible: boundary block is masked by Pallas

    # VMEM budget: double-buffered in/out blocks + resident weights + chunk temps.
    out_itemsize = jnp.dtype(out_dtype).itemsize
    in_block_bytes = tbp * PACK * noise_dim * 4
    out_block_bytes = tbp * PACK * out_dim * out_itemsize
    weight_bytes = (w1p.size + w2p.size) * 2 + (b1p.size + b2p.size) * 4
    temp_bytes = chunk * PACK * out_dim * 4 * 6
    budget = 2 * (in_block_bytes + out_block_bytes) + 2 * weight_bytes \
        + temp_bytes + (2 << 20)
    vmem_limit = int(min(max(budget, 32 << 20), 48 << 20))   # v7x-safe cap

    kernel = _make_generator_kernel(tbp, chunk)

    out = pl.pallas_call(
        kernel,
        out_shape=jax.ShapeDtypeStruct((Bp, PACK * out_dim), out_dtype),
        grid_spec=pltpu.PrefetchScalarGridSpec(
            num_scalar_prefetch=0,
            grid=grid,
            in_specs=[
                pl.BlockSpec((tbp, PACK * noise_dim), lambda i: (i, 0)),
                # Constant block index -> weights/biases stay resident in VMEM.
                pl.BlockSpec(w1p.shape, lambda i: (0, 0)),
                pl.BlockSpec(b1p.shape, lambda i: (0, 0)),
                pl.BlockSpec(w2p.shape, lambda i: (0, 0)),
                pl.BlockSpec(b2p.shape, lambda i: (0, 0)),
            ],
            out_specs=pl.BlockSpec((tbp, PACK * out_dim), lambda i: (i, 0)),
        ),
        compiler_params=pltpu.CompilerParams(
            dimension_semantics=("parallel",),    # batch tiles across TCs on v7x
            vmem_limit_bytes=vmem_limit,
        ),
    )(z_packed, w1p, b1p, w2p, b2p)

    # (Bp, 128) is byte-identical to (B_even, 64) row-major -> free reshape,
    # matching torch's out.view(-1, 1, H, W).
    img = out.reshape(B_even, 1, img_dim, img_dim)
    return img[:B] if B_even != B else img


def init_params(key, noise_dim=NOISE_DIM, hidden=HIDDEN, out_dim=OUT_DIM):
    """Deterministic init mimicking PyTorch Linear default (uniform ±1/sqrt(fan_in))."""
    k1, k2, k3, k4 = jax.random.split(key, 4)
    bound1 = 1.0 / jnp.sqrt(noise_dim)
    bound2 = 1.0 / jnp.sqrt(hidden)
    # Stored as (in, out) so the math is z @ W (== torch's z @ W.T with W (out,in)).
    w1 = jax.random.uniform(k1, (noise_dim, hidden), jnp.float32, -bound1, bound1)
    b1 = jax.random.uniform(k2, (1, hidden), jnp.float32, -bound1, bound1)
    w2 = jax.random.uniform(k3, (hidden, out_dim), jnp.float32, -bound2, bound2)
    b2 = jax.random.uniform(k4, (1, out_dim), jnp.float32, -bound2, bound2)
    return w1, b1, w2, b2


def _reference(z, w1, b1, w2, b2, img_dim=IMG_DIM):
    """Plain-JAX reference with the same bf16 matmul-input rounding as the kernel."""
    f32 = jnp.float32
    zb = z.astype(jnp.bfloat16).astype(f32)
    w1b = w1.astype(jnp.bfloat16).astype(f32)
    w2b = w2.astype(jnp.bfloat16).astype(f32)
    h = jnp.maximum(zb @ w1b + b1, 0.0)
    hb = h.astype(jnp.bfloat16).astype(f32)
    y = jax.nn.sigmoid(hb @ w2b + b2)
    return y.reshape(-1, 1, img_dim, img_dim)


if __name__ == "__main__":
    key = jax.random.PRNGKey(0)
    k_param, k_z1, k_z2, k_z3 = jax.random.split(key, 4)
    w1, b1, w2, b2 = init_params(k_param)

    # Case 1: small even batch -> grid=(2,), single compute chunk per tile.
    B1 = 64
    z1 = jax.random.normal(k_z1, (B1, NOISE_DIM), jnp.float32)
    img1 = jax.block_until_ready(generator_forward(z1, w1, b1, w2, b2))
    ref1 = _reference(z1, w1, b1, w2, b2)
    assert img1.shape == (B1, 1, IMG_DIM, IMG_DIM), img1.shape
    assert jnp.allclose(img1, ref1, atol=3e-3), float(jnp.max(jnp.abs(img1 - ref1)))

    # Case 2: odd batch, not tile-divisible -> exercises the masked boundary block.
    B2 = 37
    z2 = jax.random.normal(k_z2, (B2, NOISE_DIM), jnp.float32)
    img2 = jax.block_until_ready(generator_forward(z2, w1, b1, w2, b2))
    ref2 = _reference(z2, w1, b1, w2, b2)
    assert img2.shape == (B2, 1, IMG_DIM, IMG_DIM), img2.shape
    assert jnp.allclose(img2, ref2, atol=3e-3), float(jnp.max(jnp.abs(img2 - ref2)))

    # Case 3: larger batch -> multi-step grid plus in-kernel chunk loop.
    B3 = 4096
    z3 = jax.random.normal(k_z3, (B3, NOISE_DIM), jnp.float32)
    img3 = jax.block_until_ready(
        generator_forward(z3, w1, b1, w2, b2, block_rows=4096))
    ref3 = _reference(z3, w1, b1, w2, b2)
    assert img3.shape == (B3, 1, IMG_DIM, IMG_DIM), img3.shape
    assert jnp.allclose(img3, ref3, atol=3e-3), float(jnp.max(jnp.abs(img3 - ref3)))

    print("KERNEL_OK")
</pallas_src>

<mosaic_0001>
module attributes {stable_mosaic.version = 11 : i64} {
  func.func @kernel(%arg0: i32, %arg1: memref<16x32xf32, #tpu.memory_space<vmem>>, %arg2: memref<32x128xbf16, #tpu.memory_space<vmem>>, %arg3: memref<1x128xf32, #tpu.memory_space<vmem>>, %arg4: memref<128x128xbf16, #tpu.memory_space<vmem>>, %arg5: memref<1x128xf32, #tpu.memory_space<vmem>>, %arg6: memref<16x128xf32, #tpu.memory_space<vmem>>) attributes {dimension_semantics = [#tpu.dimension_semantics<parallel>], iteration_bounds = array<i64: 2>, scalar_prefetch = 0 : i64, scratch_operands = 0 : i64, tpu.core_type = #tpu.core_type<tc>, window_params = [{transform_indices = @transform_0, window_bounds = array<i64: 16, 32>}, {pipeline_mode = #tpu.pipeline_mode<synchronous>, transform_indices = @transform_1, window_bounds = array<i64: 32, 128>}, {pipeline_mode = #tpu.pipeline_mode<synchronous>, transform_indices = @transform_2, window_bounds = array<i64: 1, 128>}, {pipeline_mode = #tpu.pipeline_mode<synchronous>, transform_indices = @transform_3, window_bounds = array<i64: 128, 128>}, {pipeline_mode = #tpu.pipeline_mode<synchronous>, transform_indices = @transform_4, window_bounds = array<i64: 1, 128>}, {transform_indices = @transform_5, window_bounds = array<i64: 16, 128>}]} {
    %c0 = arith.constant 0 : index
    %c0_0 = arith.constant 0 : index
    %0 = vector.load %arg2[%c0, %c0_0] : memref<32x128xbf16, #tpu.memory_space<vmem>>, vector<32x128xbf16>
    %c0_1 = arith.constant 0 : index
    %c0_2 = arith.constant 0 : index
    %1 = vector.load %arg3[%c0_1, %c0_2] : memref<1x128xf32, #tpu.memory_space<vmem>>, vector<1x128xf32>
    %c0_3 = arith.constant 0 : index
    %c0_4 = arith.constant 0 : index
    %2 = vector.load %arg4[%c0_3, %c0_4] : memref<128x128xbf16, #tpu.memory_space<vmem>>, vector<128x128xbf16>
    %c0_5 = arith.constant 0 : index
    %c0_6 = arith.constant 0 : index
    %3 = vector.load %arg5[%c0_5, %c0_6] : memref<1x128xf32, #tpu.memory_space<vmem>>, vector<1x128xf32>
    %c0_i32 = arith.constant 0 : i32
    %4 = tpu.assume_multiple %c0_i32, 16 : i32
    %5 = arith.index_cast %4 : i32 to index
    %c0_7 = arith.constant 0 : index
    %6 = vector.load %arg1[%5, %c0_7] : memref<16x32xf32, #tpu.memory_space<vmem>>, vector<16x32xf32>
    %7 = arith.truncf %6 : vector<16x32xf32> to vector<16x32xbf16>
    %cst = arith.constant dense<0.000000e+00> : vector<16x128xf32>
    %8 = tpu.matmul %7, %0, %cst {dimension_numbers = #tpu.dot_dimension_numbers<[1], [0], [0], [1], [0, 0, 1, 1], [], []>} : vector<16x32xbf16>, vector<32x128xbf16>, vector<16x128xf32> -> vector<16x128xf32>
    %9 = vector.broadcast %1 : vector<1x128xf32> to vector<16x128xf32>
    %10 = arith.addf %8, %9 : vector<16x128xf32>
    %cst_8 = arith.constant 0.000000e+00 : f32
    %11 = vector.broadcast %cst_8 : f32 to vector<16x128xf32>
    %12 = arith.maximumf %10, %11 : vector<16x128xf32>
    %13 = arith.truncf %12 : vector<16x128xf32> to vector<16x128xbf16>
    %cst_9 = arith.constant dense<0.000000e+00> : vector<16x128xf32>
    %14 = tpu.matmul %13, %2, %cst_9 {dimension_numbers = #tpu.dot_dimension_numbers<[1], [0], [0], [1], [0, 0, 1, 1], [], []>} : vector<16x128xbf16>, vector<128x128xbf16>, vector<16x128xf32> -> vector<16x128xf32>
    %15 = vector.broadcast %3 : vector<1x128xf32> to vector<16x128xf32>
    %16 = arith.addf %14, %15 : vector<16x128xf32>
    %cst_10 = arith.constant 0.000000e+00 : f32
    %17 = vector.broadcast %cst_10 : f32 to vector<16x128xf32>
    %18 = arith.subf %17, %16 : vector<16x128xf32>
    %19 = math.exp %18 : vector<16x128xf32>
    %cst_11 = arith.constant 1.000000e+00 : f32
    %20 = vector.broadcast %cst_11 : f32 to vector<16x128xf32>
    %21 = arith.addf %20, %19 : vector<16x128xf32>
    %22 = tpu.reciprocal %21 {approx = true} : vector<16x128xf32> -> vector<16x128xf32>
    %23 = arith.index_cast %4 : i32 to index
    %c0_12 = arith.constant 0 : index
    %24 = vector.load %arg6[%23, %c0_12] : memref<16x128xf32, #tpu.memory_space<vmem>>, vector<16x128xf32>
    tpu.vector_store %arg6[%23, %c0_12], %22 {strides = array<i32>} : memref<16x128xf32, #tpu.memory_space<vmem>>, vector<16x128xf32>,
    return
  }
  func.func @transform_0(%arg0: i32) -> (i32, i32) {
    %c0_i32 = arith.constant 0 : i32
    %c0_i32_0 = arith.constant 0 : i32
    return %arg0, %c0_i32 : i32, i32
  }
  func.func @transform_1(%arg0: i32) -> (i32, i32) {
    %c0_i32 = arith.constant 0 : i32
    %c0_i32_0 = arith.constant 0 : i32
    %c0_i32_1 = arith.constant 0 : i32
    return %c0_i32, %c0_i32_0 : i32, i32
  }
  func.func @transform_2(%arg0: i32) -> (i32, i32) {
    %c0_i32 = arith.constant 0 : i32
    %c0_i32_0 = arith.constant 0 : i32
    %c0_i32_1 = arith.constant 0 : i32
    return %c0_i32, %c0_i32_0 : i32, i32
  }
  func.func @transform_3(%arg0: i32) -> (i32, i32) {
    %c0_i32 = arith.constant 0 : i32
    %c0_i32_0 = arith.constant 0 : i32
    %c0_i32_1 = arith.constant 0 : i32
    return %c0_i32, %c0_i32_0 : i32, i32
  }
  func.func @transform_4(%arg0: i32) -> (i32, i32) {
    %c0_i32 = arith.constant 0 : i32
    %c0_i32_0 = arith.constant 0 : i32
    %c0_i32_1 = arith.constant 0 : i32
    return %c0_i32, %c0_i32_0 : i32, i32
  }
  func.func @transform_5(%arg0: i32) -> (i32, i32) {
    %c0_i32 = arith.constant 0 : i32
    %c0_i32_0 = arith.constant 0 : i32
    return %arg0, %c0_i32 : i32, i32
  }
}

</mosaic_0001>

<llo_original>
// kernel: tpu_custom_call.1
$region0: #{tpu_custom_call.1}
  #allocation0 [shape = 'u32[]', space=smem, size = 0x4, offset = 0x4, fixed_abs, tag = 'smem constant byte address 0x4 - core index']
  #allocation1 [shape = 'u32[144,128]{1,0:T(1,128)}', space=vmem, size = 0x12000, scoped, tag = 'internal scratch']
  %s0 = inlined_call_operand.hbm [shape: f32[32,32], index: 0, kind: input, shape index: {}]
  %s1 = inlined_call_operand.hbm [shape: bf16[32,128], index: 1, kind: input, shape index: {}]
  %s2 = inlined_call_operand.vmem [shape: f32[1,128], index: 2, kind: input, shape index: {}]
  %s3 = inlined_call_operand.hbm [shape: bf16[128,128], index: 3, kind: input, shape index: {}]
  %s4 = inlined_call_operand.vmem [shape: f32[1,128], index: 4, kind: input, shape index: {}]
  %s5 = inlined_call_operand.hbm [shape: f32[32,128], index: 5, kind: output, shape index: {}]
  %s6 = sld [smem:[#allocation0]]
  $region65: #{tpu_custom_call.1} parent=0
    _
  %s8 = ssub.s32 1, %s6
  %s9 = scalar_select 0, %s8, %s6
  $region1: #{tpu_custom_call.1} parent=0
    #allocation2 [shape = 'u8[16384]{0}', space=vmem, size = 0x4000, scoped, tag = 'input window, operand 0']
    #allocation3 [shape = 's32[2]{0}', space=sflag, size = 0x8, scoped, tag = 'scoped memory for tpu_custom_call.1']
    #allocation4 [shape = 's32[2]{0}', space=sflag, size = 0x8, scoped, tag = 'scoped memory for tpu_custom_call.1']
    #allocation5 [shape = 'u8[8192]{0}', space=vmem, size = 0x2000, scoped, tag = 'input window, operand 1, single buffered']
    #allocation6 [shape = 's32[1]{0}', space=sflag, size = 0x4, scoped, tag = 'scoped memory for tpu_custom_call.1']
    #allocation7 [shape = 'u8[32768]{0}', space=vmem, size = 0x8000, scoped, tag = 'input window, operand 3, single buffered']
    #allocation8 [shape = 'u8[16384]{0}', space=vmem, size = 0x4000, scoped, tag = 'output window, operand 0']
    %10 = vsyncpa [#allocation3], 0
    %s11 = scalar_lea.sflag [#allocation3], 1
    %12 = vsyncpa %s11, 0
    %13 = vsyncpa [#allocation6], 0
    %14 = vsyncpa [#allocation4], 0
    %s15 = scalar_lea.sflag [#allocation4], 1
    %16 = vsyncpa %s15, 0
    loop: start=0, step=1, limit=4
    $region2: #{tpu_custom_call.1} parent=1 // loop_pre_header
      _
    $region3: #{tpu_custom_call.1} parent=1 // loop_header
      %s18 = sphi 0, %s22
      %p19 = scmp.ge.s32.totalorder %s18, 4
      %s28 = sphi 0, %s30
      %s31 = sphi 0, %s28
      %s32 = sphi 0, %s31
      %s48 = sphi 0, %s32
      %s52 = sphi 0, %s52
      %s54 = sphi 0, %s52
      %s55 = sphi 0, %s54
      %s69 = sphi 0, %s55
      %s73 = sphi 0, %s73
      %s75 = sphi 0, %s73
      %s76 = sphi 0, %s75
      %s90 = sphi 0, %s76
      %s94 = sphi 0, %s94
      %s96 = sphi 0, %s94
      %s97 = sphi 0, %s96
      %s111 = sphi 0, %s97
      %s115 = sphi 0, %s115
      %s117 = sphi 0, %s115
      %s118 = sphi 0, %s117
      %s132 = sphi 0, %s118
      %s138 = sphi 0, %s140
      %s141 = sphi 0, %s138
      %s142 = sphi 0, %s141
      %s158 = sphi 0, %s142
    $region4: #{tpu_custom_call.1} parent=1 // loop_header_branch
      %21 = sbr.rel (%p19) target = $region8
    $region5: #{tpu_custom_call.1} parent=1 // loop_body
      %s23 = ssub.s32 %s18, 1
      %s24 = ssub.s32 %s18, 2
      %s25 = sadd.s32 %s18, 1
      %s26 = ssub.s32 %s18, %s25
      %p27 = scmp.eq.s32.totalorder %s26, 0
      %s29 = sadd.s32 %s28, 1
      %s30 = scalar_select %p27, %s28, %s29
      %p33 = pneg %p27
      %p34 = scmp.eq.s32.totalorder %s18, 1
      %p35 = por %p33, %p34
      %p36 = scmp.ne.s32.totalorder %s28, %s31
      %p37 = scmp.eq.s32.totalorder %s18, 0
      %p38 = por %p36, %p37
      %p39 = scmp.ne.s32.totalorder %s28, %s31
      %p40 = scmp.eq.s32.totalorder %s23, 1
      %p41 = por %p39, %p40
      %p42 = scmp.ne.s32.totalorder %s31, %s32
      %p43 = scmp.eq.s32.totalorder %s23, 0
      %p44 = por %p42, %p43
      %p45 = scmp.ne.s32.totalorder %s31, %s32
      %p46 = scmp.eq.s32.totalorder %s24, 1
      %p47 = por %p45, %p46
      %p49 = scmp.ne.s32.totalorder %s32, %s48
      %p50 = scmp.eq.s32.totalorder %s24, 0
      %p51 = por %p49, %p50
      %s53 = sadd.s32 %s52, 1
      %p56 = scmp.eq.s32.totalorder %s18, 1
      %p57 = scmp.ne.s32.totalorder %s52, %s54
      %p58 = scmp.eq.s32.totalorder %s18, 0
      %p59 = por %p57, %p58
      %p60 = scmp.ne.s32.totalorder %s52, %s54
      %p61 = scmp.eq.s32.totalorder %s23, 1
      %p62 = por %p60, %p61
      %p63 = scmp.ne.s32.totalorder %s54, %s55
      %p64 = scmp.eq.s32.totalorder %s23, 0
      %p65 = por %p63, %p64
      %p66 = scmp.ne.s32.totalorder %s54, %s55
      %p67 = scmp.eq.s32.totalorder %s24, 1
      %p68 = por %p66, %p67
      %p70 = scmp.ne.s32.totalorder %s55, %s69
      %p71 = scmp.eq.s32.totalorder %s24, 0
      %p72 = por %p70, %p71
      %s74 = sadd.s32 %s73, 1
      %p77 = scmp.eq.s32.totalorder %s18, 1
      %p78 = scmp.ne.s32.totalorder %s73, %s75
      %p79 = scmp.eq.s32.totalorder %s18, 0
      %p80 = por %p78, %p79
      %p81 = scmp.ne.s32.totalorder %s73, %s75
      %p82 = scmp.eq.s32.totalorder %s23, 1
      %p83 = por %p81, %p82
      %p84 = scmp.ne.s32.totalorder %s75, %s76
      %p85 = scmp.eq.s32.totalorder %s23, 0
      %p86 = por %p84, %p85
      %p87 = scmp.ne.s32.totalorder %s75, %s76
      %p88 = scmp.eq.s32.totalorder %s24, 1
      %p89 = por %p87, %p88
      %p91 = scmp.ne.s32.totalorder %s76, %s90
      %p92 = scmp.eq.s32.totalorder %s24, 0
      %p93 = por %p91, %p92
      %s95 = sadd.s32 %s94, 1
      %p98 = scmp.eq.s32.totalorder %s18, 1
      %p99 = scmp.ne.s32.totalorder %s94, %s96
      %p100 = scmp.eq.s32.totalorder %s18, 0
      %p101 = por %p99, %p100
      %p102 = scmp.ne.s32.totalorder %s94, %s96
      %p103 = scmp.eq.s32.totalorder %s23, 1
      %p104 = por %p102, %p103
      %p105 = scmp.ne.s32.totalorder %s96, %s97
      %p106 = scmp.eq.s32.totalorder %s23, 0
      %p107 = por %p105, %p106
      %p108 = scmp.ne.s32.totalorder %s96, %s97
      %p109 = scmp.eq.s32.totalorder %s24, 1
      %p110 = por %p108, %p109
      %p112 = scmp.ne.s32.totalorder %s97, %s111
      %p113 = scmp.eq.s32.totalorder %s24, 0
      %p114 = por %p112, %p113
      %s116 = sadd.s32 %s115, 1
      %p119 = scmp.eq.s32.totalorder %s18, 1
      %p120 = scmp.ne.s32.totalorder %s115, %s117
      %p121 = scmp.eq.s32.totalorder %s18, 0
      %p122 = por %p120, %p121
      %p123 = scmp.ne.s32.totalorder %s115, %s117
      %p124 = scmp.eq.s32.totalorder %s23, 1
      %p125 = por %p123, %p124
      %p126 = scmp.ne.s32.totalorder %s117, %s118
      %p127 = scmp.eq.s32.totalorder %s23, 0
      %p128 = por %p126, %p127
      %p129 = scmp.ne.s32.totalorder %s117, %s118
      %p130 = scmp.eq.s32.totalorder %s24, 1
      %p131 = por %p129, %p130
      %p133 = scmp.ne.s32.totalorder %s118, %s132
      %p134 = scmp.eq.s32.totalorder %s24, 0
      %p135 = por %p133, %p134
      %s136 = ssub.s32 %s18, %s25
      %p137 = scmp.eq.s32.totalorder %s136, 0
      %s139 = sadd.s32 %s138, 1
      %s140 = scalar_select %p137, %s138, %s139
      %p143 = pneg %p137
      %p144 = scmp.eq.s32.totalorder %s18, 1
      %p145 = por %p143, %p144
      %p146 = scmp.ne.s32.totalorder %s138, %s141
      %p147 = scmp.eq.s32.totalorder %s18, 0
      %p148 = por %p146, %p147
      %p149 = scmp.ne.s32.totalorder %s138, %s141
      %p150 = scmp.eq.s32.totalorder %s23, 1
      %p151 = por %p149, %p150
      %p152 = scmp.ne.s32.totalorder %s141, %s142
      %p153 = scmp.eq.s32.totalorder %s23, 0
      %p154 = por %p152, %p153
      %p155 = scmp.ne.s32.totalorder %s141, %s142
      %p156 = scmp.eq.s32.totalorder %s24, 1
      %p157 = por %p155, %p156
      %p159 = scmp.ne.s32.totalorder %s142, %s158
      %p160 = scmp.eq.s32.totalorder %s24, 0
      %p161 = por %p159, %p160
      %p162 = scmp.le.s32.totalorder 1, %s18
      %p163 = scmp.lt.s32.totalorder %s18, 3
      %p164 = pnand %p162, %p163
      %p165 = pneg %p164
      // Predicated region
      $region9: #{tpu_custom_call.1} parent=5 // pred_check
        _
      $region10: #{tpu_custom_call.1} parent=5 // pred_check_branch
        %167 = sbr.rel (%p164) target = $region12
      $region11: #{tpu_custom_call.1} parent=5 // pred_region
        %s168 = ssub.s32 %s18, 1
        // Predicated region
        $region13: #{tpu_custom_call.1} parent=11 // pred_check
          %p169 = pneg %p65
        $region14: #{tpu_custom_call.1} parent=11 // pred_check_branch
          %171 = sbr.rel (%p169) target = $region16
        $region15: #{tpu_custom_call.1} parent=11 // pred_region
          %s173 = ssub.s32 256, 256
          %174 = vsyncadd [#allocation6], %s173
          %s175 = sshll.u32 [#allocation5], 4
          %s176 = int_to_ptr.vmem [resolvable:$true] %s175
          %181 = dma.hbm_to_vmem [thread:$0]  %s1, 256, %s176, [#allocation6], 64, 64, 4
        $region16: #{tpu_custom_call.1} parent=11 // pred_fallthru
          _
        // Predicated region
        $region17: #{tpu_custom_call.1} parent=11 // pred_check
          %p182 = pneg %p86
        $region18: #{tpu_custom_call.1} parent=11 // pred_check_branch
          %184 = sbr.rel (%p182) target = $region20
        $region19: #{tpu_custom_call.1} parent=11 // pred_region
          _
        $region20: #{tpu_custom_call.1} parent=11 // pred_fallthru
          _
        // Predicated region
        $region21: #{tpu_custom_call.1} parent=11 // pred_check
          %p185 = pneg %p107
        $region22: #{tpu_custom_call.1} parent=11 // pred_check_branch
          %187 = sbr.rel (%p185) target = $region24
        $region23: #{tpu_custom_call.1} parent=11 // pred_region
          %s189 = ssub.s32 1024, 1024
          %190 = vsyncadd [#allocation6], %s189
          %s191 = sshll.u32 [#allocation7], 4
          %s192 = int_to_ptr.vmem [resolvable:$true] %s191
          %197 = dma.hbm_to_vmem [thread:$0]  %s3, 1024, %s192, [#allocation6], 64, 64, 4
        $region24: #{tpu_custom_call.1} parent=11 // pred_fallthru
          _
        // Predicated region
        $region25: #{tpu_custom_call.1} parent=11 // pred_check
          %p198 = pneg %p128
        $region26: #{tpu_custom_call.1} parent=11 // pred_check_branch
          %200 = sbr.rel (%p198) target = $region28
        $region27: #{tpu_custom_call.1} parent=11 // pred_region
          _
        $region28: #{tpu_custom_call.1} parent=11 // pred_fallthru
          _
      $region12: #{tpu_custom_call.1} parent=5 // pred_fallthru
        _
      %p201 = scmp.lt.s32.totalorder %s18, 2
      // Predicated region
      $region29: #{tpu_custom_call.1} parent=5 // pred_check
        %p202 = pneg %p201
      $region30: #{tpu_custom_call.1} parent=5 // pred_check_branch
        %204 = sbr.rel (%p202) target = $region32
      $region31: #{tpu_custom_call.1} parent=5 // pred_region
        // Predicated region
        $region33: #{tpu_custom_call.1} parent=31 // pred_check
          %p205 = pneg %p38
        $region34: #{tpu_custom_call.1} parent=31 // pred_check_branch
          %207 = sbr.rel (%p205) target = $region36
        $region35: #{tpu_custom_call.1} parent=31 // pred_region
          %s208 = sand.u32 %s28, 1
          %s209 = scalar_lea.sflag [#allocation3], %s208
          %s210 = sand.u32 %s28, 1
          %s211 = smul.addr %s210, 16
          %s212 = scalar_lea.vmem [#allocation2], %s211
          %s213 = smul.u32 2, %s18
          %s215 = ssub.s32 256, 256
          %216 = vsyncadd %s209, %s215
          %s217 = smul.addr %s213, 128
          %s218 = scalar_lea.hbm %s0, %s217
          %s219 = sshll.u32 %s212, 4
          %s220 = int_to_ptr.vmem [resolvable:$true] %s219
          %225 = dma.hbm_to_vmem [thread:$0]  %s218, 256, %s220, %s209, 128, 128, 8
        $region36: #{tpu_custom_call.1} parent=31 // pred_fallthru
          _
      $region32: #{tpu_custom_call.1} parent=5 // pred_fallthru
        _
      %p226 = scmp.le.s32.totalorder 1, %s18
      %p227 = scmp.lt.s32.totalorder %s18, 3
      %p228 = pnand %p226, %p227
      %p229 = pneg %p228
      // Predicated region
      $region37: #{tpu_custom_call.1} parent=5 // pred_check
        _
      $region38: #{tpu_custom_call.1} parent=5 // pred_check_branch
        %231 = sbr.rel (%p228) target = $region40
      $region39: #{tpu_custom_call.1} parent=5 // pred_region
        %s232 = ssub.s32 %s18, 1
        %s233 = sand.u32 %s31, 1
        %s234 = scalar_lea.sflag [#allocation3], %s233
        %s235 = sand.u32 %s31, 1
        %s236 = smul.addr %s235, 16
        %s237 = scalar_lea.vmem [#allocation2], %s236
        // Predicated region
        $region41: #{tpu_custom_call.1} parent=39 // pred_check
          %p238 = pneg %p44
        $region42: #{tpu_custom_call.1} parent=39 // pred_check_branch
          %240 = sbr.rel (%p238) target = $region44
        $region43: #{tpu_custom_call.1} parent=39 // pred_region
          %241 = dma.done %s234, 256
        $region44: #{tpu_custom_call.1} parent=39 // pred_fallthru
          _
        // Predicated region
        $region45: #{tpu_custom_call.1} parent=39 // pred_check
          %p242 = pneg %p65
        $region46: #{tpu_custom_call.1} parent=39 // pred_check_branch
          %244 = sbr.rel (%p242) target = $region48
        $region47: #{tpu_custom_call.1} parent=39 // pred_region
          %245 = dma.done [#allocation6], 256
        $region48: #{tpu_custom_call.1} parent=39 // pred_fallthru
          _
        // Predicated region
        $region49: #{tpu_custom_call.1} parent=39 // pred_check
          %p246 = pneg %p107
        $region50: #{tpu_custom_call.1} parent=39 // pred_check_branch
          %248 = sbr.rel (%p246) target = $region52
        $region51: #{tpu_custom_call.1} parent=39 // pred_region
          %249 = dma.done [#allocation6], 1024
        $region52: #{tpu_custom_call.1} parent=39 // pred_fallthru
          _
        %s250 = sand.u32 %s31, 1
        %s251 = scalar_lea.sflag [#allocation3], %s250
        %s252 = sand.u32 %s31, 1
        %s253 = smul.addr %s252, 16
        %s254 = scalar_lea.vmem [#allocation2], %s253
        %p255 = pneg %p44
        %p256 = pneg %p41
        %p257 = pneg %p65
        %p258 = pneg %p62
        %p259 = pneg %p86
        %p260 = pneg %p83
        %p261 = pneg %p107
        %p262 = pneg %p104
        %p263 = pneg %p128
        %p264 = pneg %p125
        %p265 = pneg %p154
        %p266 = pneg %p151
        %s267 = sand.u32 %s141, 1
        %s268 = scalar_lea.sflag [#allocation4], %s267
        %s269 = sand.u32 %s141, 1
        %s270 = smul.addr %s269, 16
        %s271 = scalar_lea.vmem [#allocation8], %s270
        %s272 = smul.u32 2, %s23
        %s273 = smul.u32 2, %s23
        %v275 = vld [vmem:[#allocation5] sm:$0xf]
        %v276 = vld [vmem:[#allocation5 + $0x4] sm:$0xf]
        %v277 = vld [vmem:[#allocation5 + $0x8] sm:$0xf]
        %v278 = vld [vmem:[#allocation5 + $0xc] sm:$0xf]
        %v279 = vld [vmem:[%s2] sm:$0x1]
        %v280 = vld [vmem:[#allocation7] sm:$0xf]
        %v281 = vld [vmem:[#allocation7 + $0x4] sm:$0xf]
        %v282 = vld [vmem:[#allocation7 + $0x8] sm:$0xf]
        %v283 = vld [vmem:[#allocation7 + $0xc] sm:$0xf]
        %v284 = vld [vmem:[#allocation7 + $0x10] sm:$0xf]
        %v285 = vld [vmem:[#allocation7 + $0x14] sm:$0xf]
        %v286 = vld [vmem:[#allocation7 + $0x18] sm:$0xf]
        %v287 = vld [vmem:[#allocation7 + $0x1c] sm:$0xf]
        %v288 = vld [vmem:[#allocation7 + $0x20] sm:$0xf]
        %v289 = vld [vmem:[#allocation7 + $0x24] sm:$0xf]
        %v290 = vld [vmem:[#allocation7 + $0x28] sm:$0xf]
        %v291 = vld [vmem:[#allocation7 + $0x2c] sm:$0xf]
        %v292 = vld [vmem:[#allocation7 + $0x30] sm:$0xf]
        %v293 = vld [vmem:[#allocation7 + $0x34] sm:$0xf]
        %v294 = vld [vmem:[#allocation7 + $0x38] sm:$0xf]
        %v295 = vld [vmem:[#allocation7 + $0x3c] sm:$0xf]
        %v296 = vld [vmem:[%s4] sm:$0x1]
        %v297 = vld [vmem:[%s237] sm:$0xff]
        %v298 = vld [vmem:[%s237 + $0x8] sm:$0xff]
        %v299 = vpack.c.bf16 %v298, %v297
        %v301 = vlaneseq
        %v302 = vshrl.u32 %v301, 7
        %v303 = vsub.s32 0, %v302
        %v304 = vrot.slane %v279, %v303
        %v310 = vunpack.c.l.b16 %v275
        %v311 = vunpack.c.l.b16 %v276
        %v312 = vunpack.c.l.b16 %v277
        %v313 = vunpack.c.l.b16 %v278
        %v314 = vpack.c.b16 %v311, %v310
        %v315 = vpack.c.b16 %v313, %v312
        %vm318 = vcmask 261120
        %v320 = vsel %vm318, %v299, 0
        %322 = vmatprep.subr.bf16.mxu0 0
        %323 = vmatpush1.bf16.msra.mxu0 %v314
        %324 = vmatprep.subr.bf16.mxu0 0
        %325 = vmatpush1.bf16.msra.mxu0 %v315
        %326 = vmatprep.subr.bf16.mxu0 0
        %327 = vmatpush1.bf16.msra.mxu0 0
        %328 = vmatprep.subr.bf16.mxu0 0
        %329 = vmatpush1.bf16.msra.mxu0 0
        %330 = vmatprep.subr.bf16.mxu0 0
        %331 = vmatpush1.bf16.msra.mxu0 0
        %332 = vmatprep.subr.bf16.mxu0 0
        %333 = vmatpush1.bf16.msra.mxu0 0
        %334 = vmatprep.subr.bf16.mxu0 0
        %335 = vmatpush1.bf16.msra.mxu0 0
        %336 = vmatprep.subr.bf16.mxu0 0
        %337 = vmatpush1.bf16.msra.mxu0 0
        %338 = vmatprep.subr.bf16.mxu0 0
        %339 = vmatpush1.bf16.msra.mxu0 0
        %340 = vmatprep.subr.bf16.mxu0 0
        %341 = vmatpush1.bf16.msra.mxu0 0
        %342 = vmatprep.subr.bf16.mxu0 0
        %343 = vmatpush1.bf16.msra.mxu0 0
        %344 = vmatprep.subr.bf16.mxu0 0
        %345 = vmatpush1.bf16.msra.mxu0 0
        %346 = vmatprep.subr.bf16.mxu0 0
        %347 = vmatpush1.bf16.msra.mxu0 0
        %348 = vmatprep.subr.bf16.mxu0 0
        %349 = vmatpush1.bf16.msra.mxu0 0
        %350 = vmatprep.subr.bf16.mxu0 0
        %351 = vmatpush1.bf16.msra.mxu0 0
        %352 = vmatprep.subr.bf16.mxu0 0
        %353 = vmatpush1.bf16.msra.mxu0 0
        %354 = vmatprep.mubr.bf16.mxu0 0
        %355 = vmatmul.mubr.bf16.gmra.mrb[0].mxu0 %v320
        %v356 = vpop.f32.mrb[0].mxu0
        %v357 = vadd.f32 %v304, %v356
        %v358 = vpop.f32.mrb[0].mxu0
        %v359 = vpop.f32.mrb[0].mxu0
        %v360 = vadd.f32 %v304, %v359
        %v361 = vpop.f32.mrb[0].mxu0
        %362 = vdwg.mxu0
        %v363 = vmax.f32 %v357, 0.0
        %v364 = vmax.f32 %v360, 0.0
        %v365 = vpack.c.bf16 %v364, %v363
        %v367 = vlaneseq
        %v368 = vshrl.u32 %v367, 7
        %v369 = vsub.s32 0, %v368
        %v370 = vrot.slane %v296, %v369
        %v388 = vunpack.c.l.b16 %v280
        %v389 = vunpack.c.l.b16 %v281
        %v390 = vunpack.c.l.b16 %v282
        %v391 = vunpack.c.l.b16 %v283
        %v392 = vunpack.c.l.b16 %v284
        %v393 = vunpack.c.l.b16 %v285
        %v394 = vunpack.c.l.b16 %v286
        %v395 = vunpack.c.l.b16 %v287
        %v396 = vunpack.c.l.b16 %v288
        %v397 = vunpack.c.l.b16 %v289
        %v398 = vunpack.c.l.b16 %v290
        %v399 = vunpack.c.l.b16 %v291
        %v400 = vunpack.c.l.b16 %v292
        %v401 = vunpack.c.l.b16 %v293
        %v402 = vunpack.c.l.b16 %v294
        %v403 = vunpack.c.l.b16 %v295
        %v404 = vpack.c.b16 %v389, %v388
        %v405 = vpack.c.b16 %v391, %v390
        %v406 = vpack.c.b16 %v393, %v392
        %v407 = vpack.c.b16 %v395, %v394
        %v408 = vpack.c.b16 %v397, %v396
        %v409 = vpack.c.b16 %v399, %v398
        %v410 = vpack.c.b16 %v401, %v400
        %v411 = vpack.c.b16 %v403, %v402
        %420 = vmatprep.subr.bf16.mxu0 0
        %421 = vmatpush1.bf16.msra.mxu0 %v404
        %422 = vmatprep.subr.bf16.mxu0 0
        %423 = vmatpush1.bf16.msra.mxu0 %v405
        %424 = vmatprep.subr.bf16.mxu0 0
        %425 = vmatpush1.bf16.msra.mxu0 %v406
        %426 = vmatprep.subr.bf16.mxu0 0
        %427 = vmatpush1.bf16.msra.mxu0 %v407
        %428 = vmatprep.subr.bf16.mxu0 0
        %429 = vmatpush1.bf16.msra.mxu0 %v408
        %430 = vmatprep.subr.bf16.mxu0 0
        %431 = vmatpush1.bf16.msra.mxu0 %v409
        %432 = vmatprep.subr.bf16.mxu0 0
        %433 = vmatpush1.bf16.msra.mxu0 %v410
        %434 = vmatprep.subr.bf16.mxu0 0
        %435 = vmatpush1.bf16.msra.mxu0 %v411
        %436 = vmatprep.subr.bf16.mxu0 0
        %437 = vmatpush1.bf16.msra.mxu0 0
        %438 = vmatprep.subr.bf16.mxu0 0
        %439 = vmatpush1.bf16.msra.mxu0 0
        %440 = vmatprep.subr.bf16.mxu0 0
        %441 = vmatpush1.bf16.msra.mxu0 0
        %442 = vmatprep.subr.bf16.mxu0 0
        %443 = vmatpush1.bf16.msra.mxu0 0
        %444 = vmatprep.subr.bf16.mxu0 0
        %445 = vmatpush1.bf16.msra.mxu0 0
        %446 = vmatprep.subr.bf16.mxu0 0
        %447 = vmatpush1.bf16.msra.mxu0 0
        %448 = vmatprep.subr.bf16.mxu0 0
        %449 = vmatpush1.bf16.msra.mxu0 0
        %450 = vmatprep.subr.bf16.mxu0 0
        %451 = vmatpush1.bf16.msra.mxu0 0
        %452 = vmatprep.mubr.bf16.mxu0 0
        %453 = vmatmul.mubr.bf16.gmra.mrb[0].mxu0 %v365
        %v454 = vpop.f32.mrb[0].mxu0
        %v455 = vadd.f32 %v370, %v454
        %v456 = vpop.f32.mrb[0].mxu0
        %v457 = vpop.f32.mrb[0].mxu0
        %v458 = vadd.f32 %v370, %v457
        %v459 = vpop.f32.mrb[0].mxu0
        %460 = vdwg.mxu0
        %v461 = vsub.f32 0.0, %v455
        %v462 = vsub.f32 0.0, %v458
        %v463 = vmul.f32 %v461, 1.442695
        %v464 = vpow.pop %v463
        %v465 = vmul.f32 %v462, 1.442695
        %v466 = vpow.pop %v465
        %v467 = vadd.f32 %v464, 1.0
        %v468 = vadd.f32 %v466, 1.0
        %v469 = vrcp.pop %v467
        %v470 = vrcp.pop %v468
        %471 = vst [vmem:[%s271] sm:$0xff] %v469
        %472 = vst [vmem:[%s271 + $0x8] sm:$0xff] %v470
        %s473 = sand.u32 %s141, 1
        %s474 = scalar_lea.sflag [#allocation4], %s473
        %s475 = sand.u32 %s141, 1
        %s476 = smul.addr %s475, 16
        %s477 = scalar_lea.vmem [#allocation8], %s476
        // Predicated region
        $region53: #{tpu_custom_call.1} parent=39 // pred_check
          %p478 = pneg %p151
        $region54: #{tpu_custom_call.1} parent=39 // pred_check_branch
          %480 = sbr.rel (%p478) target = $region56
        $region55: #{tpu_custom_call.1} parent=39 // pred_region
          %s481 = smul.u32 2, %s23
          %s483 = ssub.s32 256, 256
          %484 = vsyncadd %s474, %s483
          %s485 = smul.addr %s481, 128
          %s486 = scalar_lea.hbm %s5, %s485
          %s487 = sshll.u32 %s477, 4
          %s488 = int_to_ptr.vmem [resolvable:$true] %s487
          %493 = dma.vmem_to_hbm [thread:$0]  %s488, 256, %s486, %s474, 128, 128, 8
        $region56: #{tpu_custom_call.1} parent=39 // pred_fallthru
          _
      $region40: #{tpu_custom_call.1} parent=5 // pred_fallthru
        _
      %p494 = scmp.le.s32.totalorder 2, %s18
      // Predicated region
      $region57: #{tpu_custom_call.1} parent=5 // pred_check
        %p495 = pneg %p494
      $region58: #{tpu_custom_call.1} parent=5 // pred_check_branch
        %497 = sbr.rel (%p495) target = $region60
      $region59: #{tpu_custom_call.1} parent=5 // pred_region
        %s498 = ssub.s32 %s18, 2
        // Predicated region
        $region61: #{tpu_custom_call.1} parent=59 // pred_check
          %p499 = pneg %p157
        $region62: #{tpu_custom_call.1} parent=59 // pred_check_branch
          %501 = sbr.rel (%p499) target = $region64
        $region63: #{tpu_custom_call.1} parent=59 // pred_region
          %s502 = sand.u32 %s142, 1
          %s503 = scalar_lea.sflag [#allocation4], %s502
          %s504 = sand.u32 %s142, 1
          %s505 = smul.addr %s504, 16
          %s506 = scalar_lea.vmem [#allocation8], %s505
          %507 = dma.done %s503, 256
        $region64: #{tpu_custom_call.1} parent=59 // pred_fallthru
          _
      $region60: #{tpu_custom_call.1} parent=5 // pred_fallthru
        _
    $region6: #{tpu_custom_call.1} parent=1 // loop_footer
      %s22 = sadd.s32 1, %s18
    $region7: #{tpu_custom_call.1} parent=1 // loop_footer_branch
      %17 = sbr.rel target = $region3
    $region8: #{tpu_custom_call.1} parent=1 // loop_exit
      _
    %508 = vsyncpa [#allocation3], 1
    %s509 = scalar_lea.sflag [#allocation3], 1
    %510 = vsyncpa %s509, 1
    %511 = vsyncpa [#allocation6], 1
    %512 = vsyncpa [#allocation4], 1
    %s513 = scalar_lea.sflag [#allocation4], 1
    %514 = vsyncpa %s513, 1

</llo_original>
